<compile_context>
chip_gen: v5e
topology: v5e:2x2
jax: 0.10.0
libtpu: 0.0.40
codegen_flags: <defaults>
</compile_context>

<pallas_src>
import jax
import jax.numpy as jnp
from jax.experimental import pallas as pl
from jax.experimental.pallas import tpu as pltpu


# -----------------------------------------------------------------------------
# Pallas kernel (one independent sequence per grid step)
# -----------------------------------------------------------------------------
def critic_kernel(x_ref,      # (S, F)    f32   input sequence (batch squeezed)
                  wih_ref,    # (F, 4H)   bf16  lstm weight_ih^T (gate order i,f,g,o)
                  whh_ref,    # (H, 4H)   bf16  lstm weight_hh^T (true K = H)
                  b_ref,      # (1, 4H)   f32   b_ih + b_hh
                  w1_ref,     # (H, D1)   bf16  dense_1 weight^T
                  b1_ref,     # (1, D1)   f32
                  w2_ref,     # (D1, D2)  bf16  dense_2 weight^T
                  b2_ref,     # (1, D2)   f32
                  w3_ref,     # (D2, 1)   bf16  dense_3 weight^T
                  b3_ref,     # (1, 1)    f32
                  out_ref):   # (1, 1)    f32   sigmoid(reward)
    seq_len = x_ref.shape[0]
    gw = wih_ref.shape[1]              # 4H (packed gate width)
    hidden = gw // 4                   # H

    # Input projection hoisted out of the recurrence: one (S,F)@(F,4H) MXU
    # matmul for all timesteps.  The bf16 cast of x is a free VPU pack here.
    xg = (jnp.dot(x_ref[...].astype(jnp.bfloat16), wih_ref[...],
                  preferred_element_type=jnp.float32)
          + b_ref[...])                                    # (S, 4H) f32

    whh = whh_ref[...]                                     # loop-invariant, bf16

    # h/c live in full 4H-lane vectors so the packed-gate math stays
    # whole-vreg.  Lanes [H, 4H) hold bounded don't-cares (products of rotated
    # gates) and are never read: the recurrence and the head only consume
    # h[:, :H].
    h = jnp.zeros((1, gw), jnp.float32)
    c = jnp.zeros((1, gw), jnp.float32)

    # seq_len is static & small -> fully unroll so the scheduler can overlap
    # MXU / EUP / XLU work across steps.  (Switch to lax.fori_loop with
    # partial unroll + xg in VMEM scratch if seq_len grows beyond ~64.)
    for t in range(seq_len):
        # Recurrent matmul on the valid lanes only: (1,H) @ (H,4H), K = H.
        rec = jnp.dot(h[:, :hidden].astype(jnp.bfloat16), whh,
                      preferred_element_type=jnp.float32)  # (1, 4H) f32
        gates = xg[t:t + 1, :] + rec                       # packed [ i | f | g | o ]

        # Whole-vreg activations: 2 EUP pushes cover all four gates.
        sig_all = jax.nn.sigmoid(gates)                    # valid for i, f, o slots
        tanh_all = jnp.tanh(gates)                         # valid for g slot

        # Realign f/g/o to lanes [0, H) with XLU lane rotations (pltpu.roll
        # guarantees vrot; positive shifts == jnp.roll by -k*H).
        i_g = sig_all
        f_g = pltpu.roll(sig_all, gw - hidden, axis=1)
        g_g = pltpu.roll(tanh_all, gw - 2 * hidden, axis=1)
        o_g = pltpu.roll(sig_all, gw - 3 * hidden, axis=1)

        c = f_g * c + i_g * g_g                            # f32 elementwise
        h = o_g * jnp.tanh(c)                              # 3rd EUP push / step

    # lstm_out.squeeze()[-1, :] == h_T -> relu -> MLP head -> sigmoid.
    # Head runs once; bf16 MXU operands, f32 accumulate, f32 bias/sigmoid.
    h_last = jnp.maximum(h[:, :hidden], 0.0).astype(jnp.bfloat16)   # (1, H)
    d1 = jnp.maximum(
        jnp.dot(h_last, w1_ref[...], preferred_element_type=jnp.float32)
        + b1_ref[...], 0.0)                                          # (1, D1)
    d2 = jnp.maximum(
        jnp.dot(d1.astype(jnp.bfloat16), w2_ref[...],
                preferred_element_type=jnp.float32)
        + b2_ref[...], 0.0)                                          # (1, D2)
    d3 = (jnp.dot(d2.astype(jnp.bfloat16), w3_ref[...],
                  preferred_element_type=jnp.float32)
          + b3_ref[...])                                             # (1, 1)
    out_ref[...] = jax.nn.sigmoid(d3)


# -----------------------------------------------------------------------------
# Wrappers
# -----------------------------------------------------------------------------
@jax.jit
def critic_forward_many(xs, params):
    """xs: (N, S, F) f32 — N independent sequences, each evaluated exactly as
    the module's batch==1 forward.  Returns (N,) f32 rewards."""
    N, S, F = xs.shape

    def full_spec(shape):
        nd = len(shape)
        return pl.BlockSpec(shape, lambda n, nd=nd: (0,) * nd)

    out = pl.pallas_call(
        critic_kernel,
        out_shape=jax.ShapeDtypeStruct((N, 1, 1), jnp.float32),
        grid=(N,),
        in_specs=[
            # per-sequence input block; batch dim squeezed out of the kernel
            pl.BlockSpec((None, S, F), lambda n: (n, 0, 0)),
            # weights: whole-array blocks with constant index maps -> resident
            # across grid steps (not re-DMA'd between consecutive sequences)
            full_spec(params["wih_t"].shape),
            full_spec(params["whh_t"].shape),
            full_spec(params["b_lstm"].shape),
            full_spec(params["w1_t"].shape),
            full_spec(params["b1"].shape),
            full_spec(params["w2_t"].shape),
            full_spec(params["b2"].shape),
            full_spec(params["w3_t"].shape),
            full_spec(params["b3"].shape),
        ],
        out_specs=pl.BlockSpec((None, 1, 1), lambda n: (n, 0, 0)),
        compiler_params=pltpu.CompilerParams(
            dimension_semantics=("parallel",)),   # megacore shard on v7x
    )(xs,
      params["wih_t"], params["whh_t"], params["b_lstm"],
      params["w1_t"], params["b1"],
      params["w2_t"], params["b2"],
      params["w3_t"], params["b3"])
    return out.reshape(N)


def critic_forward(x, params):
    """Module-faithful forward.  x: (1, S, F) f32 (batch_first, batch must be
    1 because the torch module does lstm_out.squeeze()[-1, :]).  Returns (1,)."""
    if x.ndim != 3 or x.shape[0] != 1:
        raise ValueError("CriticModel.forward only supports batch_first input "
                         "with batch == 1 (it does lstm_out.squeeze()[-1, :]).")
    return critic_forward_many(x, params)


# -----------------------------------------------------------------------------
# Deterministic parameter construction (mirrors torch module shapes)
# -----------------------------------------------------------------------------
def make_params(key, feature_len, lstm_len, dense_1_len, dense_2_len):
    # TODO(synk): dense_2_len == 0 path (module skips dense_2) not wired here.
    assert dense_2_len > 0
    keys = jax.random.split(key, 10)
    scale = 0.1

    # torch LSTM params: weight_ih (4H, F), weight_hh (4H, H), biases (4H,)
    w_ih = scale * jax.random.normal(keys[0], (4 * lstm_len, feature_len), jnp.float32)
    w_hh = scale * jax.random.normal(keys[1], (4 * lstm_len, lstm_len), jnp.float32)
    b_ih = scale * jax.random.normal(keys[2], (4 * lstm_len,), jnp.float32)
    b_hh = scale * jax.random.normal(keys[3], (4 * lstm_len,), jnp.float32)

    # Linear layers: torch weight is (out, in); we store transposed (in, out).
    w1 = scale * jax.random.normal(keys[4], (dense_1_len, lstm_len), jnp.float32)
    b1 = scale * jax.random.normal(keys[5], (dense_1_len,), jnp.float32)
    w2 = scale * jax.random.normal(keys[6], (dense_2_len, dense_1_len), jnp.float32)
    b2 = scale * jax.random.normal(keys[7], (dense_2_len,), jnp.float32)
    w3 = scale * jax.random.normal(keys[8], (1, dense_2_len), jnp.float32)
    b3 = scale * jax.random.normal(keys[9], (1,), jnp.float32)

    return {
        # bf16 MXU operands (f32 accumulate in-kernel).
        "wih_t": w_ih.T.astype(jnp.bfloat16),   # (F, 4H)
        "whh_t": w_hh.T.astype(jnp.bfloat16),   # (H, 4H) — true K=H contraction
        "b_lstm": (b_ih + b_hh)[None, :],       # (1, 4H) f32
        "w1_t": w1.T.astype(jnp.bfloat16),      # (H, D1)
        "b1": b1[None, :],
        "w2_t": w2.T.astype(jnp.bfloat16),      # (D1, D2)
        "b2": b2[None, :],
        "w3_t": w3.T.astype(jnp.bfloat16),      # (D2, 1)
        "b3": b3[None, :],
        # full-f32 copies for the pure-JAX reference only.
        "_wih_f32": w_ih.T, "_whh_f32": w_hh.T,
        "_w1_f32": w1.T, "_w2_f32": w2.T, "_w3_f32": w3.T,
    }


# -----------------------------------------------------------------------------
# Pure-JAX reference (mirrors torch semantics, full f32)
# -----------------------------------------------------------------------------
def reference_forward(x, params):
    x2d = x[0].astype(jnp.float32)                          # (S, F)
    wih, whh = params["_wih_f32"], params["_whh_f32"]
    hidden = whh.shape[0]
    h = jnp.zeros((1, hidden), jnp.float32)
    c = jnp.zeros((1, hidden), jnp.float32)
    for t in range(x2d.shape[0]):
        gates = x2d[t:t + 1] @ wih + h @ whh + params["b_lstm"]
        i_g = jax.nn.sigmoid(gates[:, 0 * hidden:1 * hidden])
        f_g = jax.nn.sigmoid(gates[:, 1 * hidden:2 * hidden])
        g_g = jnp.tanh(gates[:, 2 * hidden:3 * hidden])
        o_g = jax.nn.sigmoid(gates[:, 3 * hidden:4 * hidden])
        c = f_g * c + i_g * g_g
        h = o_g * jnp.tanh(c)
    h = jnp.maximum(h, 0.0)
    d1 = jnp.maximum(h @ params["_w1_f32"] + params["b1"], 0.0)
    d2 = jnp.maximum(d1 @ params["_w2_f32"] + params["b2"], 0.0)
    d3 = d2 @ params["_w3_f32"] + params["b3"]
    return jax.nn.sigmoid(d3).reshape(1)


if __name__ == "__main__":
    # Small shapes consistent with the module (module batch must be 1).
    feature_len, lstm_len, dense_1_len, dense_2_len = 16, 32, 32, 16
    seq_len, n_seqs = 8, 4

    key = jax.random.PRNGKey(0)
    k_x, k_p = jax.random.split(key)
    xs = jax.random.normal(k_x, (n_seqs, seq_len, feature_len), jnp.float32)
    params = make_params(k_p, feature_len, lstm_len, dense_1_len, dense_2_len)

    # Module-faithful batch==1 forward.
    out1 = jax.block_until_ready(critic_forward(xs[:1], params))
    ref1 = reference_forward(xs[:1], params)
    assert out1.shape == (1,)
    assert jnp.allclose(out1, ref1, rtol=2e-2, atol=2e-2), (out1, ref1)

    # Batched evaluation of independent sequences over the parallel grid axis.
    out_n = jax.block_until_ready(critic_forward_many(xs, params))
    ref_n = jnp.concatenate([reference_forward(xs[i:i + 1], params)
                             for i in range(n_seqs)])
    assert out_n.shape == (n_seqs,)
    assert jnp.allclose(out_n, ref_n, rtol=2e-2, atol=2e-2), (out_n, ref_n)

    print("KERNEL_OK")
</pallas_src>

<mosaic_0001>
module attributes {stable_mosaic.version = 11 : i64} {
  func.func @critic_kernel(%arg0: i32, %arg1: memref<1x8x16xf32, #tpu.memory_space<vmem>>, %arg2: memref<16x128xbf16, #tpu.memory_space<vmem>>, %arg3: memref<32x128xbf16, #tpu.memory_space<vmem>>, %arg4: memref<1x128xf32, #tpu.memory_space<vmem>>, %arg5: memref<32x32xbf16, #tpu.memory_space<vmem>>, %arg6: memref<1x32xf32, #tpu.memory_space<vmem>>, %arg7: memref<32x16xbf16, #tpu.memory_space<vmem>>, %arg8: memref<1x16xf32, #tpu.memory_space<vmem>>, %arg9: memref<16x1xbf16, #tpu.memory_space<vmem>>, %arg10: memref<1x1xf32, #tpu.memory_space<vmem>>, %arg11: memref<1x1x1xf32, #tpu.memory_space<vmem>>) attributes {dimension_semantics = [#tpu.dimension_semantics<parallel>], iteration_bounds = array<i64: 1>, scalar_prefetch = 0 : i64, scratch_operands = 0 : i64, tpu.core_type = #tpu.core_type<tc>, window_params = [{transform_indices = @transform_0, window_bounds = array<i64: 1, 8, 16>}, {pipeline_mode = #tpu.pipeline_mode<synchronous>, transform_indices = @transform_1, window_bounds = array<i64: 16, 128>}, {pipeline_mode = #tpu.pipeline_mode<synchronous>, transform_indices = @transform_2, window_bounds = array<i64: 32, 128>}, {pipeline_mode = #tpu.pipeline_mode<synchronous>, transform_indices = @transform_3, window_bounds = array<i64: 1, 128>}, {pipeline_mode = #tpu.pipeline_mode<synchronous>, transform_indices = @transform_4, window_bounds = array<i64: 32, 32>}, {pipeline_mode = #tpu.pipeline_mode<synchronous>, transform_indices = @transform_5, window_bounds = array<i64: 1, 32>}, {pipeline_mode = #tpu.pipeline_mode<synchronous>, transform_indices = @transform_6, window_bounds = array<i64: 32, 16>}, {pipeline_mode = #tpu.pipeline_mode<synchronous>, transform_indices = @transform_7, window_bounds = array<i64: 1, 16>}, {pipeline_mode = #tpu.pipeline_mode<synchronous>, transform_indices = @transform_8, window_bounds = array<i64: 16, 1>}, {pipeline_mode = #tpu.pipeline_mode<synchronous>, transform_indices = @transform_9, window_bounds = array<i64: 1, 1>}, {transform_indices = @transform_10, window_bounds = array<i64: 1, 1, 1>}]} {
    %c0 = arith.constant 0 : index
    %c0_0 = arith.constant 0 : index
    %c0_1 = arith.constant 0 : index
    %0 = vector.load %arg1[%c0, %c0_0, %c0_1] : memref<1x8x16xf32, #tpu.memory_space<vmem>>, vector<1x8x16xf32>
    %1 = vector.shape_cast %0 : vector<1x8x16xf32> to vector<8x16xf32>
    %2 = arith.truncf %1 : vector<8x16xf32> to vector<8x16xbf16>
    %c0_2 = arith.constant 0 : index
    %c0_3 = arith.constant 0 : index
    %3 = vector.load %arg2[%c0_2, %c0_3] : memref<16x128xbf16, #tpu.memory_space<vmem>>, vector<16x128xbf16>
    %cst = arith.constant dense<0.000000e+00> : vector<8x128xf32>
    %4 = tpu.matmul %2, %3, %cst {dimension_numbers = #tpu.dot_dimension_numbers<[1], [0], [0], [1], [0, 0, 1, 1], [], []>} : vector<8x16xbf16>, vector<16x128xbf16>, vector<8x128xf32> -> vector<8x128xf32>
    %c0_4 = arith.constant 0 : index
    %c0_5 = arith.constant 0 : index
    %5 = vector.load %arg4[%c0_4, %c0_5] : memref<1x128xf32, #tpu.memory_space<vmem>>, vector<1x128xf32>
    %6 = vector.broadcast %5 : vector<1x128xf32> to vector<8x128xf32>
    %7 = arith.addf %4, %6 : vector<8x128xf32>
    %c0_6 = arith.constant 0 : index
    %c0_7 = arith.constant 0 : index
    %8 = vector.load %arg3[%c0_6, %c0_7] : memref<32x128xbf16, #tpu.memory_space<vmem>>, vector<32x128xbf16>
    %cst_8 = arith.constant 0.000000e+00 : f32
    %9 = vector.broadcast %cst_8 : f32 to vector<1x128xf32>
    %cst_9 = arith.constant 0.000000e+00 : f32
    %10 = vector.broadcast %cst_9 : f32 to vector<1x128xf32>
    %11 = vector.extract_strided_slice %9 {offsets = [0, 0], sizes = [1, 32], strides = [1, 1]} : vector<1x128xf32> to vector<1x32xf32>
    %12 = arith.truncf %11 : vector<1x32xf32> to vector<1x32xbf16>
    %cst_10 = arith.constant dense<0.000000e+00> : vector<1x128xf32>
    %13 = tpu.matmul %12, %8, %cst_10 {dimension_numbers = #tpu.dot_dimension_numbers<[1], [0], [0], [1], [0, 0, 1, 1], [], []>} : vector<1x32xbf16>, vector<32x128xbf16>, vector<1x128xf32> -> vector<1x128xf32>
    %14 = vector.extract_strided_slice %7 {offsets = [0, 0], sizes = [1, 128], strides = [1, 1]} : vector<8x128xf32> to vector<1x128xf32>
    %15 = arith.addf %14, %13 : vector<1x128xf32>
    %16 = arith.negf %15 : vector<1x128xf32>
    %17 = math.exp %16 : vector<1x128xf32>
    %cst_11 = arith.constant 1.000000e+00 : f32
    %18 = vector.broadcast %cst_11 : f32 to vector<1x128xf32>
    %19 = arith.addf %18, %17 : vector<1x128xf32>
    %20 = arith.divf %18, %19 : vector<1x128xf32>
    %21 = math.tanh %15 : vector<1x128xf32>
    %c96_i32 = arith.constant 96 : i32
    %22 = tpu.dynamic_rotate %20 by %c96_i32 dim 1 : vector<1x128xf32>, i32 -> vector<1x128xf32>
    %c64_i32 = arith.constant 64 : i32
    %23 = tpu.dynamic_rotate %21 by %c64_i32 dim 1 : vector<1x128xf32>, i32 -> vector<1x128xf32>
    %c32_i32 = arith.constant 32 : i32
    %24 = tpu.dynamic_rotate %20 by %c32_i32 dim 1 : vector<1x128xf32>, i32 -> vector<1x128xf32>
    %25 = arith.mulf %22, %10 : vector<1x128xf32>
    %26 = arith.mulf %20, %23 : vector<1x128xf32>
    %27 = arith.addf %25, %26 : vector<1x128xf32>
    %28 = math.tanh %27 : vector<1x128xf32>
    %29 = arith.mulf %24, %28 : vector<1x128xf32>
    %30 = vector.extract_strided_slice %29 {offsets = [0, 0], sizes = [1, 32], strides = [1, 1]} : vector<1x128xf32> to vector<1x32xf32>
    %31 = arith.truncf %30 : vector<1x32xf32> to vector<1x32xbf16>
    %cst_12 = arith.constant dense<0.000000e+00> : vector<1x128xf32>
    %32 = tpu.matmul %31, %8, %cst_12 {dimension_numbers = #tpu.dot_dimension_numbers<[1], [0], [0], [1], [0, 0, 1, 1], [], []>} : vector<1x32xbf16>, vector<32x128xbf16>, vector<1x128xf32> -> vector<1x128xf32>
    %33 = vector.extract_strided_slice %7 {offsets = [1, 0], sizes = [1, 128], strides = [1, 1]} : vector<8x128xf32> to vector<1x128xf32>
    %34 = arith.addf %33, %32 : vector<1x128xf32>
    %35 = arith.negf %34 : vector<1x128xf32>
    %36 = math.exp %35 : vector<1x128xf32>
    %cst_13 = arith.constant 1.000000e+00 : f32
    %37 = vector.broadcast %cst_13 : f32 to vector<1x128xf32>
    %38 = arith.addf %37, %36 : vector<1x128xf32>
    %39 = arith.divf %37, %38 : vector<1x128xf32>
    %40 = math.tanh %34 : vector<1x128xf32>
    %c96_i32_14 = arith.constant 96 : i32
    %41 = tpu.dynamic_rotate %39 by %c96_i32_14 dim 1 : vector<1x128xf32>, i32 -> vector<1x128xf32>
    %c64_i32_15 = arith.constant 64 : i32
    %42 = tpu.dynamic_rotate %40 by %c64_i32_15 dim 1 : vector<1x128xf32>, i32 -> vector<1x128xf32>
    %c32_i32_16 = arith.constant 32 : i32
    %43 = tpu.dynamic_rotate %39 by %c32_i32_16 dim 1 : vector<1x128xf32>, i32 -> vector<1x128xf32>
    %44 = arith.mulf %41, %27 : vector<1x128xf32>
    %45 = arith.mulf %39, %42 : vector<1x128xf32>
    %46 = arith.addf %44, %45 : vector<1x128xf32>
    %47 = math.tanh %46 : vector<1x128xf32>
    %48 = arith.mulf %43, %47 : vector<1x128xf32>
    %49 = vector.extract_strided_slice %48 {offsets = [0, 0], sizes = [1, 32], strides = [1, 1]} : vector<1x128xf32> to vector<1x32xf32>
    %50 = arith.truncf %49 : vector<1x32xf32> to vector<1x32xbf16>
    %cst_17 = arith.constant dense<0.000000e+00> : vector<1x128xf32>
    %51 = tpu.matmul %50, %8, %cst_17 {dimension_numbers = #tpu.dot_dimension_numbers<[1], [0], [0], [1], [0, 0, 1, 1], [], []>} : vector<1x32xbf16>, vector<32x128xbf16>, vector<1x128xf32> -> vector<1x128xf32>
    %52 = vector.extract_strided_slice %7 {offsets = [2, 0], sizes = [1, 128], strides = [1, 1]} : vector<8x128xf32> to vector<1x128xf32>
    %53 = arith.addf %52, %51 : vector<1x128xf32>
    %54 = arith.negf %53 : vector<1x128xf32>
    %55 = math.exp %54 : vector<1x128xf32>
    %cst_18 = arith.constant 1.000000e+00 : f32
    %56 = vector.broadcast %cst_18 : f32 to vector<1x128xf32>
    %57 = arith.addf %56, %55 : vector<1x128xf32>
    %58 = arith.divf %56, %57 : vector<1x128xf32>
    %59 = math.tanh %53 : vector<1x128xf32>
    %c96_i32_19 = arith.constant 96 : i32
    %60 = tpu.dynamic_rotate %58 by %c96_i32_19 dim 1 : vector<1x128xf32>, i32 -> vector<1x128xf32>
    %c64_i32_20 = arith.constant 64 : i32
    %61 = tpu.dynamic_rotate %59 by %c64_i32_20 dim 1 : vector<1x128xf32>, i32 -> vector<1x128xf32>
    %c32_i32_21 = arith.constant 32 : i32
    %62 = tpu.dynamic_rotate %58 by %c32_i32_21 dim 1 : vector<1x128xf32>, i32 -> vector<1x128xf32>
    %63 = arith.mulf %60, %46 : vector<1x128xf32>
    %64 = arith.mulf %58, %61 : vector<1x128xf32>
    %65 = arith.addf %63, %64 : vector<1x128xf32>
    %66 = math.tanh %65 : vector<1x128xf32>
    %67 = arith.mulf %62, %66 : vector<1x128xf32>
    %68 = vector.extract_strided_slice %67 {offsets = [0, 0], sizes = [1, 32], strides = [1, 1]} : vector<1x128xf32> to vector<1x32xf32>
    %69 = arith.truncf %68 : vector<1x32xf32> to vector<1x32xbf16>
    %cst_22 = arith.constant dense<0.000000e+00> : vector<1x128xf32>
    %70 = tpu.matmul %69, %8, %cst_22 {dimension_numbers = #tpu.dot_dimension_numbers<[1], [0], [0], [1], [0, 0, 1, 1], [], []>} : vector<1x32xbf16>, vector<32x128xbf16>, vector<1x128xf32> -> vector<1x128xf32>
    %71 = vector.extract_strided_slice %7 {offsets = [3, 0], sizes = [1, 128], strides = [1, 1]} : vector<8x128xf32> to vector<1x128xf32>
    %72 = arith.addf %71, %70 : vector<1x128xf32>
    %73 = arith.negf %72 : vector<1x128xf32>
    %74 = math.exp %73 : vector<1x128xf32>
    %cst_23 = arith.constant 1.000000e+00 : f32
    %75 = vector.broadcast %cst_23 : f32 to vector<1x128xf32>
    %76 = arith.addf %75, %74 : vector<1x128xf32>
    %77 = arith.divf %75, %76 : vector<1x128xf32>
    %78 = math.tanh %72 : vector<1x128xf32>
    %c96_i32_24 = arith.constant 96 : i32
    %79 = tpu.dynamic_rotate %77 by %c96_i32_24 dim 1 : vector<1x128xf32>, i32 -> vector<1x128xf32>
    %c64_i32_25 = arith.constant 64 : i32
    %80 = tpu.dynamic_rotate %78 by %c64_i32_25 dim 1 : vector<1x128xf32>, i32 -> vector<1x128xf32>
    %c32_i32_26 = arith.constant 32 : i32
    %81 = tpu.dynamic_rotate %77 by %c32_i32_26 dim 1 : vector<1x128xf32>, i32 -> vector<1x128xf32>
    %82 = arith.mulf %79, %65 : vector<1x128xf32>
    %83 = arith.mulf %77, %80 : vector<1x128xf32>
    %84 = arith.addf %82, %83 : vector<1x128xf32>
    %85 = math.tanh %84 : vector<1x128xf32>
    %86 = arith.mulf %81, %85 : vector<1x128xf32>
    %87 = vector.extract_strided_slice %86 {offsets = [0, 0], sizes = [1, 32], strides = [1, 1]} : vector<1x128xf32> to vector<1x32xf32>
    %88 = arith.truncf %87 : vector<1x32xf32> to vector<1x32xbf16>
    %cst_27 = arith.constant dense<0.000000e+00> : vector<1x128xf32>
    %89 = tpu.matmul %88, %8, %cst_27 {dimension_numbers = #tpu.dot_dimension_numbers<[1], [0], [0], [1], [0, 0, 1, 1], [], []>} : vector<1x32xbf16>, vector<32x128xbf16>, vector<1x128xf32> -> vector<1x128xf32>
    %90 = vector.extract_strided_slice %7 {offsets = [4, 0], sizes = [1, 128], strides = [1, 1]} : vector<8x128xf32> to vector<1x128xf32>
    %91 = arith.addf %90, %89 : vector<1x128xf32>
    %92 = arith.negf %91 : vector<1x128xf32>
    %93 = math.exp %92 : vector<1x128xf32>
    %cst_28 = arith.constant 1.000000e+00 : f32
    %94 = vector.broadcast %cst_28 : f32 to vector<1x128xf32>
    %95 = arith.addf %94, %93 : vector<1x128xf32>
    %96 = arith.divf %94, %95 : vector<1x128xf32>
    %97 = math.tanh %91 : vector<1x128xf32>
    %c96_i32_29 = arith.constant 96 : i32
    %98 = tpu.dynamic_rotate %96 by %c96_i32_29 dim 1 : vector<1x128xf32>, i32 -> vector<1x128xf32>
    %c64_i32_30 = arith.constant 64 : i32
    %99 = tpu.dynamic_rotate %97 by %c64_i32_30 dim 1 : vector<1x128xf32>, i32 -> vector<1x128xf32>
    %c32_i32_31 = arith.constant 32 : i32
    %100 = tpu.dynamic_rotate %96 by %c32_i32_31 dim 1 : vector<1x128xf32>, i32 -> vector<1x128xf32>
    %101 = arith.mulf %98, %84 : vector<1x128xf32>
    %102 = arith.mulf %96, %99 : vector<1x128xf32>
    %103 = arith.addf %101, %102 : vector<1x128xf32>
    %104 = math.tanh %103 : vector<1x128xf32>
    %105 = arith.mulf %100, %104 : vector<1x128xf32>
    %106 = vector.extract_strided_slice %105 {offsets = [0, 0], sizes = [1, 32], strides = [1, 1]} : vector<1x128xf32> to vector<1x32xf32>
    %107 = arith.truncf %106 : vector<1x32xf32> to vector<1x32xbf16>
    %cst_32 = arith.constant dense<0.000000e+00> : vector<1x128xf32>
    %108 = tpu.matmul %107, %8, %cst_32 {dimension_numbers = #tpu.dot_dimension_numbers<[1], [0], [0], [1], [0, 0, 1, 1], [], []>} : vector<1x32xbf16>, vector<32x128xbf16>, vector<1x128xf32> -> vector<1x128xf32>
    %109 = vector.extract_strided_slice %7 {offsets = [5, 0], sizes = [1, 128], strides = [1, 1]} : vector<8x128xf32> to vector<1x128xf32>
    %110 = arith.addf %109, %108 : vector<1x128xf32>
    %111 = arith.negf %110 : vector<1x128xf32>
    %112 = math.exp %111 : vector<1x128xf32>
    %cst_33 = arith.constant 1.000000e+00 : f32
    %113 = vector.broadcast %cst_33 : f32 to vector<1x128xf32>
    %114 = arith.addf %113, %112 : vector<1x128xf32>
    %115 = arith.divf %113, %114 : vector<1x128xf32>
    %116 = math.tanh %110 : vector<1x128xf32>
    %c96_i32_34 = arith.constant 96 : i32
    %117 = tpu.dynamic_rotate %115 by %c96_i32_34 dim 1 : vector<1x128xf32>, i32 -> vector<1x128xf32>
    %c64_i32_35 = arith.constant 64 : i32
    %118 = tpu.dynamic_rotate %116 by %c64_i32_35 dim 1 : vector<1x128xf32>, i32 -> vector<1x128xf32>
    %c32_i32_36 = arith.constant 32 : i32
    %119 = tpu.dynamic_rotate %115 by %c32_i32_36 dim 1 : vector<1x128xf32>, i32 -> vector<1x128xf32>
    %120 = arith.mulf %117, %103 : vector<1x128xf32>
    %121 = arith.mulf %115, %118 : vector<1x128xf32>
    %122 = arith.addf %120, %121 : vector<1x128xf32>
    %123 = math.tanh %122 : vector<1x128xf32>
    %124 = arith.mulf %119, %123 : vector<1x128xf32>
    %125 = vector.extract_strided_slice %124 {offsets = [0, 0], sizes = [1, 32], strides = [1, 1]} : vector<1x128xf32> to vector<1x32xf32>
    %126 = arith.truncf %125 : vector<1x32xf32> to vector<1x32xbf16>
    %cst_37 = arith.constant dense<0.000000e+00> : vector<1x128xf32>
    %127 = tpu.matmul %126, %8, %cst_37 {dimension_numbers = #tpu.dot_dimension_numbers<[1], [0], [0], [1], [0, 0, 1, 1], [], []>} : vector<1x32xbf16>, vector<32x128xbf16>, vector<1x128xf32> -> vector<1x128xf32>
    %128 = vector.extract_strided_slice %7 {offsets = [6, 0], sizes = [1, 128], strides = [1, 1]} : vector<8x128xf32> to vector<1x128xf32>
    %129 = arith.addf %128, %127 : vector<1x128xf32>
    %130 = arith.negf %129 : vector<1x128xf32>
    %131 = math.exp %130 : vector<1x128xf32>
    %cst_38 = arith.constant 1.000000e+00 : f32
    %132 = vector.broadcast %cst_38 : f32 to vector<1x128xf32>
    %133 = arith.addf %132, %131 : vector<1x128xf32>
    %134 = arith.divf %132, %133 : vector<1x128xf32>
    %135 = math.tanh %129 : vector<1x128xf32>
    %c96_i32_39 = arith.constant 96 : i32
    %136 = tpu.dynamic_rotate %134 by %c96_i32_39 dim 1 : vector<1x128xf32>, i32 -> vector<1x128xf32>
    %c64_i32_40 = arith.constant 64 : i32
    %137 = tpu.dynamic_rotate %135 by %c64_i32_40 dim 1 : vector<1x128xf32>, i32 -> vector<1x128xf32>
    %c32_i32_41 = arith.constant 32 : i32
    %138 = tpu.dynamic_rotate %134 by %c32_i32_41 dim 1 : vector<1x128xf32>, i32 -> vector<1x128xf32>
    %139 = arith.mulf %136, %122 : vector<1x128xf32>
    %140 = arith.mulf %134, %137 : vector<1x128xf32>
    %141 = arith.addf %139, %140 : vector<1x128xf32>
    %142 = math.tanh %141 : vector<1x128xf32>
    %143 = arith.mulf %138, %142 : vector<1x128xf32>
    %144 = vector.extract_strided_slice %143 {offsets = [0, 0], sizes = [1, 32], strides = [1, 1]} : vector<1x128xf32> to vector<1x32xf32>
    %145 = arith.truncf %144 : vector<1x32xf32> to vector<1x32xbf16>
    %cst_42 = arith.constant dense<0.000000e+00> : vector<1x128xf32>
    %146 = tpu.matmul %145, %8, %cst_42 {dimension_numbers = #tpu.dot_dimension_numbers<[1], [0], [0], [1], [0, 0, 1, 1], [], []>} : vector<1x32xbf16>, vector<32x128xbf16>, vector<1x128xf32> -> vector<1x128xf32>
    %147 = vector.extract_strided_slice %7 {offsets = [7, 0], sizes = [1, 128], strides = [1, 1]} : vector<8x128xf32> to vector<1x128xf32>
    %148 = arith.addf %147, %146 : vector<1x128xf32>
    %149 = arith.negf %148 : vector<1x128xf32>
    %150 = math.exp %149 : vector<1x128xf32>
    %cst_43 = arith.constant 1.000000e+00 : f32
    %151 = vector.broadcast %cst_43 : f32 to vector<1x128xf32>
    %152 = arith.addf %151, %150 : vector<1x128xf32>
    %153 = arith.divf %151, %152 : vector<1x128xf32>
    %154 = math.tanh %148 : vector<1x128xf32>
    %c96_i32_44 = arith.constant 96 : i32
    %155 = tpu.dynamic_rotate %153 by %c96_i32_44 dim 1 : vector<1x128xf32>, i32 -> vector<1x128xf32>
    %c64_i32_45 = arith.constant 64 : i32
    %156 = tpu.dynamic_rotate %154 by %c64_i32_45 dim 1 : vector<1x128xf32>, i32 -> vector<1x128xf32>
    %c32_i32_46 = arith.constant 32 : i32
    %157 = tpu.dynamic_rotate %153 by %c32_i32_46 dim 1 : vector<1x128xf32>, i32 -> vector<1x128xf32>
    %158 = arith.mulf %155, %141 : vector<1x128xf32>
    %159 = arith.mulf %153, %156 : vector<1x128xf32>
    %160 = arith.addf %158, %159 : vector<1x128xf32>
    %161 = math.tanh %160 : vector<1x128xf32>
    %162 = arith.mulf %157, %161 : vector<1x128xf32>
    %163 = vector.extract_strided_slice %162 {offsets = [0, 0], sizes = [1, 32], strides = [1, 1]} : vector<1x128xf32> to vector<1x32xf32>
    %cst_47 = arith.constant 0.000000e+00 : f32
    %164 = vector.broadcast %cst_47 : f32 to vector<1x32xf32>
    %165 = arith.maximumf %163, %164 : vector<1x32xf32>
    %166 = arith.truncf %165 : vector<1x32xf32> to vector<1x32xbf16>
    %c0_48 = arith.constant 0 : index
    %c0_49 = arith.constant 0 : index
    %167 = vector.load %arg5[%c0_48, %c0_49] : memref<32x32xbf16, #tpu.memory_space<vmem>>, vector<32x32xbf16>
    %cst_50 = arith.constant dense<0.000000e+00> : vector<1x32xf32>
    %168 = tpu.matmul %166, %167, %cst_50 {dimension_numbers = #tpu.dot_dimension_numbers<[1], [0], [0], [1], [0, 0, 1, 1], [], []>} : vector<1x32xbf16>, vector<32x32xbf16>, vector<1x32xf32> -> vector<1x32xf32>
    %c0_51 = arith.constant 0 : index
    %c0_52 = arith.constant 0 : index
    %169 = vector.load %arg6[%c0_51, %c0_52] : memref<1x32xf32, #tpu.memory_space<vmem>>, vector<1x32xf32>
    %170 = arith.addf %168, %169 : vector<1x32xf32>
    %cst_53 = arith.constant 0.000000e+00 : f32
    %171 = vector.broadcast %cst_53 : f32 to vector<1x32xf32>
    %172 = arith.maximumf %170, %171 : vector<1x32xf32>
    %173 = arith.truncf %172 : vector<1x32xf32> to vector<1x32xbf16>
    %c0_54 = arith.constant 0 : index
    %c0_55 = arith.constant 0 : index
    %174 = vector.load %arg7[%c0_54, %c0_55] : memref<32x16xbf16, #tpu.memory_space<vmem>>, vector<32x16xbf16>
    %cst_56 = arith.constant dense<0.000000e+00> : vector<1x16xf32>
    %175 = tpu.matmul %173, %174, %cst_56 {dimension_numbers = #tpu.dot_dimension_numbers<[1], [0], [0], [1], [0, 0, 1, 1], [], []>} : vector<1x32xbf16>, vector<32x16xbf16>, vector<1x16xf32> -> vector<1x16xf32>
    %c0_57 = arith.constant 0 : index
    %c0_58 = arith.constant 0 : index
    %176 = vector.load %arg8[%c0_57, %c0_58] : memref<1x16xf32, #tpu.memory_space<vmem>>, vector<1x16xf32>
    %177 = arith.addf %175, %176 : vector<1x16xf32>
    %cst_59 = arith.constant 0.000000e+00 : f32
    %178 = vector.broadcast %cst_59 : f32 to vector<1x16xf32>
    %179 = arith.maximumf %177, %178 : vector<1x16xf32>
    %180 = arith.truncf %179 : vector<1x16xf32> to vector<1x16xbf16>
    %c0_60 = arith.constant 0 : index
    %c0_61 = arith.constant 0 : index
    %181 = vector.load %arg9[%c0_60, %c0_61] : memref<16x1xbf16, #tpu.memory_space<vmem>>, vector<16x1xbf16>
    %cst_62 = arith.constant dense<0.000000e+00> : vector<1x1xf32>
    %182 = tpu.matmul %180, %181, %cst_62 {dimension_numbers = #tpu.dot_dimension_numbers<[1], [0], [0], [1], [0, 0, 1, 1], [], []>} : vector<1x16xbf16>, vector<16x1xbf16>, vector<1x1xf32> -> vector<1x1xf32>
    %c0_63 = arith.constant 0 : index
    %c0_64 = arith.constant 0 : index
    %183 = vector.load %arg10[%c0_63, %c0_64] : memref<1x1xf32, #tpu.memory_space<vmem>>, vector<1x1xf32>
    %184 = arith.addf %182, %183 : vector<1x1xf32>
    %185 = arith.negf %184 : vector<1x1xf32>
    %186 = math.exp %185 : vector<1x1xf32>
    %cst_65 = arith.constant 1.000000e+00 : f32
    %187 = vector.broadcast %cst_65 : f32 to vector<1x1xf32>
    %188 = arith.addf %187, %186 : vector<1x1xf32>
    %189 = arith.divf %187, %188 : vector<1x1xf32>
    %c0_66 = arith.constant 0 : index
    %c0_67 = arith.constant 0 : index
    %c0_68 = arith.constant 0 : index
    %190 = vector.load %arg11[%c0_66, %c0_67, %c0_68] : memref<1x1x1xf32, #tpu.memory_space<vmem>>, vector<1x1x1xf32>
    %191 = vector.shape_cast %190 : vector<1x1x1xf32> to vector<1x1xf32>
    %192 = vector.shape_cast %189 : vector<1x1xf32> to vector<1x1x1xf32>
    tpu.vector_store %arg11[%c0_66, %c0_67, %c0_68], %192 {strides = array<i32>} : memref<1x1x1xf32, #tpu.memory_space<vmem>>, vector<1x1x1xf32>,
    return
  }
  func.func @transform_0(%arg0: i32) -> (i32, i32, i32) {
    %c0_i32 = arith.constant 0 : i32
    %c0_i32_0 = arith.constant 0 : i32
    %c0_i32_1 = arith.constant 0 : i32
    return %arg0, %c0_i32, %c0_i32_0 : i32, i32, i32
  }
  func.func @transform_1(%arg0: i32) -> (i32, i32) {
    %c0_i32 = arith.constant 0 : i32
    %c0_i32_0 = arith.constant 0 : i32
    %c0_i32_1 = arith.constant 0 : i32
    return %c0_i32, %c0_i32_0 : i32, i32
  }
  func.func @transform_2(%arg0: i32) -> (i32, i32) {
    %c0_i32 = arith.constant 0 : i32
    %c0_i32_0 = arith.constant 0 : i32
    %c0_i32_1 = arith.constant 0 : i32
    return %c0_i32, %c0_i32_0 : i32, i32
  }
  func.func @transform_3(%arg0: i32) -> (i32, i32) {
    %c0_i32 = arith.constant 0 : i32
    %c0_i32_0 = arith.constant 0 : i32
    %c0_i32_1 = arith.constant 0 : i32
    return %c0_i32, %c0_i32_0 : i32, i32
  }
  func.func @transform_4(%arg0: i32) -> (i32, i32) {
    %c0_i32 = arith.constant 0 : i32
    %c0_i32_0 = arith.constant 0 : i32
    %c0_i32_1 = arith.constant 0 : i32
    return %c0_i32, %c0_i32_0 : i32, i32
  }
  func.func @transform_5(%arg0: i32) -> (i32, i32) {
    %c0_i32 = arith.constant 0 : i32
    %c0_i32_0 = arith.constant 0 : i32
    %c0_i32_1 = arith.constant 0 : i32
    return %c0_i32, %c0_i32_0 : i32, i32
  }
  func.func @transform_6(%arg0: i32) -> (i32, i32) {
    %c0_i32 = arith.constant 0 : i32
    %c0_i32_0 = arith.constant 0 : i32
    %c0_i32_1 = arith.constant 0 : i32
    return %c0_i32, %c0_i32_0 : i32, i32
  }
  func.func @transform_7(%arg0: i32) -> (i32, i32) {
    %c0_i32 = arith.constant 0 : i32
    %c0_i32_0 = arith.constant 0 : i32
    %c0_i32_1 = arith.constant 0 : i32
    return %c0_i32, %c0_i32_0 : i32, i32
  }
  func.func @transform_8(%arg0: i32) -> (i32, i32) {
    %c0_i32 = arith.constant 0 : i32
    %c0_i32_0 = arith.constant 0 : i32
    %c0_i32_1 = arith.constant 0 : i32
    return %c0_i32, %c0_i32_0 : i32, i32
  }
  func.func @transform_9(%arg0: i32) -> (i32, i32) {
    %c0_i32 = arith.constant 0 : i32
    %c0_i32_0 = arith.constant 0 : i32
    %c0_i32_1 = arith.constant 0 : i32
    return %c0_i32, %c0_i32_0 : i32, i32
  }
  func.func @transform_10(%arg0: i32) -> (i32, i32, i32) {
    %c0_i32 = arith.constant 0 : i32
    %c0_i32_0 = arith.constant 0 : i32
    %c0_i32_1 = arith.constant 0 : i32
    return %arg0, %c0_i32, %c0_i32_0 : i32, i32, i32
  }
}

</mosaic_0001>

<llo_original>
// kernel: critic_forward_many.1
$region0: #{critic_forward_many.1}
  #allocation0 [shape = 'u32[]', space=smem, size = 0x4, offset = 0x4, fixed_abs, tag = 'smem constant byte address 0x4 - core index']
  #allocation1 [shape = 'u32[72,128]{1,0:T(1,128)}', space=vmem, size = 0x9000, scoped, tag = 'internal scratch']
  #allocation2 [shape = 'f32[1,1]{1,0:T(1,128)S(1)}', space=vmem, size = 0x200, scoped, tag = 'scoped memory for critic_forward_many.1']
  %s0 = inlined_call_operand.vmem [shape: f32[1,8,16], index: 0, kind: input, shape index: {}]
  %s1 = inlined_call_operand.vmem [shape: bf16[16,128], index: 1, kind: input, shape index: {}]
  %s2 = inlined_call_operand.vmem [shape: bf16[32,128], index: 2, kind: input, shape index: {}]
  %s3 = inlined_call_operand.vmem [shape: f32[1,128], index: 3, kind: input, shape index: {}]
  %s4 = inlined_call_operand.hbm [shape: bf16[32,32], index: 4, kind: input, shape index: {}]
  %s5 = inlined_call_operand.hbm [shape: f32[1,32], index: 5, kind: input, shape index: {}]
  %s6 = inlined_call_operand.vmem [shape: bf16[32,16], index: 6, kind: input, shape index: {}]
  %s7 = inlined_call_operand.hbm [shape: f32[1,16], index: 7, kind: input, shape index: {}]
  %s8 = inlined_call_operand.vmem [shape: bf16[16,1], index: 8, kind: input, shape index: {}]
  %s9 = inlined_call_operand.<no memory space> [shape: f32[1,1], index: 9, kind: input, shape index: {}]
  %s10 = inlined_call_operand.hbm [shape: f32[1,1,1], index: 10, kind: output, shape index: {}]
  %s11 = sld [smem:[#allocation0]]
  $region62: #{critic_forward_many.1} parent=0
    _
  %s13 = ssub.s32 1, %s11
  %s14 = scalar_select 0, %s13, %s11
  %v15 = vstv %s9
  %16 = vst [vmem:[#allocation2] sm:$0x1] %v15
  $region1: #{critic_forward_many.1} parent=0
    #allocation3 [shape = 'u8[8192]{0}', space=vmem, size = 0x2000, scoped, tag = 'input window, operand 4, single buffered']
    #allocation4 [shape = 's32[1]{0}', space=sflag, size = 0x4, scoped, tag = 'scoped memory for critic_forward_many.1']
    #allocation5 [shape = 's32[1]{0}', space=sflag, size = 0x4, scoped, tag = 'scoped memory for critic_forward_many.1']
    #allocation6 [shape = 'u8[512]{0}', space=vmem, size = 0x400, scoped, tag = 'input window, operand 5, single buffered']
    #allocation7 [shape = 's32[1]{0}', space=sflag, size = 0x4, scoped, tag = 'scoped memory for critic_forward_many.1']
    #allocation8 [shape = 'u8[512]{0}', space=vmem, size = 0x400, scoped, tag = 'input window, operand 7, single buffered']
    #allocation9 [shape = 'u8[512]{0}', space=vmem, size = 0x400, scoped, tag = 'output window, operand 0, single buffered']
    %17 = vsyncpa [#allocation4], 0
    %18 = vsyncpa [#allocation7], 0
    %19 = vsyncpa [#allocation5], 0
    // Predicated region
    $region2: #{critic_forward_many.1} parent=1 // pred_check
      _
    $region3: #{critic_forward_many.1} parent=1 // pred_check_branch
      %21 = sbr.rel (0) target = $region5
    $region4: #{critic_forward_many.1} parent=1 // pred_region
      _
    $region5: #{critic_forward_many.1} parent=1 // pred_fallthru
      _
    // Predicated region
    $region6: #{critic_forward_many.1} parent=1 // pred_check
      _
    $region7: #{critic_forward_many.1} parent=1 // pred_check_branch
      %23 = sbr.rel (0) target = $region9
    $region8: #{critic_forward_many.1} parent=1 // pred_region
      _
    $region9: #{critic_forward_many.1} parent=1 // pred_fallthru
      _
    // Predicated region
    $region10: #{critic_forward_many.1} parent=1 // pred_check
      _
    $region11: #{critic_forward_many.1} parent=1 // pred_check_branch
      %25 = sbr.rel (0) target = $region13
    $region12: #{critic_forward_many.1} parent=1 // pred_region
      _
    $region13: #{critic_forward_many.1} parent=1 // pred_fallthru
      _
    // Predicated region
    $region14: #{critic_forward_many.1} parent=1 // pred_check
      _
    $region15: #{critic_forward_many.1} parent=1 // pred_check_branch
      %27 = sbr.rel (0) target = $region17
    $region16: #{critic_forward_many.1} parent=1 // pred_region
      _
    $region17: #{critic_forward_many.1} parent=1 // pred_fallthru
      _
    // Predicated region
    $region18: #{critic_forward_many.1} parent=1 // pred_check
      _
    $region19: #{critic_forward_many.1} parent=1 // pred_check_branch
      %29 = sbr.rel (0) target = $region21
    $region20: #{critic_forward_many.1} parent=1 // pred_region
      %31 = vsyncadd [#allocation4], 0
      %s32 = sshll.u32 %s4, 4
      %s33 = int_to_ptr.hbm [resolvable:$true] %s32
      %s34 = sshll.u32 [#allocation3], 4
      %s35 = int_to_ptr.vmem [resolvable:$true] %s34
      %40 = dma.hbm_to_vmem [thread:$0]  %s33, 256, %s35, [#allocation4], 64, 64, 4
    $region21: #{critic_forward_many.1} parent=1 // pred_fallthru
      _
    // Predicated region
    $region22: #{critic_forward_many.1} parent=1 // pred_check
      _
    $region23: #{critic_forward_many.1} parent=1 // pred_check_branch
      %42 = sbr.rel (0) target = $region25
    $region24: #{critic_forward_many.1} parent=1 // pred_region
      %44 = vsyncadd [#allocation7], 0
      %s46 = sshll.u32 %s5, 4
      %s47 = int_to_ptr.hbm [resolvable:$true] %s46
      %s48 = sshll.u32 [#allocation6], 4
      %s49 = int_to_ptr.vmem [resolvable:$true] %s48
      %51 = dma.hbm_to_vmem [thread:$0]  %s47, 16, %s49, [#allocation7]
    $region25: #{critic_forward_many.1} parent=1 // pred_fallthru
      _
    // Predicated region
    $region26: #{critic_forward_many.1} parent=1 // pred_check
      _
    $region27: #{critic_forward_many.1} parent=1 // pred_check_branch
      %53 = sbr.rel (0) target = $region29
    $region28: #{critic_forward_many.1} parent=1 // pred_region
      _
    $region29: #{critic_forward_many.1} parent=1 // pred_fallthru
      _
    // Predicated region
    $region30: #{critic_forward_many.1} parent=1 // pred_check
      _
    $region31: #{critic_forward_many.1} parent=1 // pred_check_branch
      %55 = sbr.rel (0) target = $region33
    $region32: #{critic_forward_many.1} parent=1 // pred_region
      %57 = vsyncadd [#allocation7], 0
      %s59 = sshll.u32 %s7, 4
      %s60 = int_to_ptr.hbm [resolvable:$true] %s59
      %s61 = sshll.u32 [#allocation8], 4
      %s62 = int_to_ptr.vmem [resolvable:$true] %s61
      %64 = dma.hbm_to_vmem [thread:$0]  %s60, 16, %s62, [#allocation7]
    $region33: #{critic_forward_many.1} parent=1 // pred_fallthru
      _
    // Predicated region
    $region34: #{critic_forward_many.1} parent=1 // pred_check
      _
    $region35: #{critic_forward_many.1} parent=1 // pred_check_branch
      %66 = sbr.rel (0) target = $region37
    $region36: #{critic_forward_many.1} parent=1 // pred_region
      _
    $region37: #{critic_forward_many.1} parent=1 // pred_fallthru
      _
    // Predicated region
    $region38: #{critic_forward_many.1} parent=1 // pred_check
      _
    $region39: #{critic_forward_many.1} parent=1 // pred_check_branch
      %68 = sbr.rel (0) target = $region41
    $region40: #{critic_forward_many.1} parent=1 // pred_region
      _
    $region41: #{critic_forward_many.1} parent=1 // pred_fallthru
      _
    // Predicated region
    $region42: #{critic_forward_many.1} parent=1 // pred_check
      _
    $region43: #{critic_forward_many.1} parent=1 // pred_check_branch
      %70 = sbr.rel (0) target = $region45
    $region44: #{critic_forward_many.1} parent=1 // pred_region
      %72 = dma.done [#allocation4], 256
    $region45: #{critic_forward_many.1} parent=1 // pred_fallthru
      _
    // Predicated region
    $region46: #{critic_forward_many.1} parent=1 // pred_check
      _
    $region47: #{critic_forward_many.1} parent=1 // pred_check_branch
      %74 = sbr.rel (0) target = $region49
    $region48: #{critic_forward_many.1} parent=1 // pred_region
      %76 = dma.done [#allocation7], 16
    $region49: #{critic_forward_many.1} parent=1 // pred_fallthru
      _
    // Predicated region
    $region50: #{critic_forward_many.1} parent=1 // pred_check
      _
    $region51: #{critic_forward_many.1} parent=1 // pred_check_branch
      %78 = sbr.rel (0) target = $region53
    $region52: #{critic_forward_many.1} parent=1 // pred_region
      %80 = dma.done [#allocation7], 16
    $region53: #{critic_forward_many.1} parent=1 // pred_fallthru
      _
    %v82 = vld [vmem:[%s0] sm:$0xff]
    %v83 = vpack.c.bf16 %v82, %v82
    %v84 = vld [vmem:[%s1] sm:$0xf]
    %v85 = vld [vmem:[%s1 + $0x4] sm:$0xf]
    %v86 = vld [vmem:[%s3] sm:$0x1]
    %v88 = vperm.slane %v86, 0
    %v92 = vunpack.c.l.b16 %v84
    %v93 = vunpack.c.l.b16 %v85
    %v94 = vpack.c.b16 %v93, %v92
    %vm96 = vcmask 130048
    %v98 = vsel %vm96, %v83, 0
    %100 = vmatpush.bf16.msra.mxu0 0
    %101 = vmatpush.bf16.msra.mxu0 0
    %102 = vmatpush.bf16.msra.mxu0 0
    %103 = vmatpush.bf16.msra.mxu0 0
    %104 = vmatpush.bf16.msra.mxu0 0
    %105 = vmatpush.bf16.msra.mxu0 0
    %106 = vmatpush.bf16.msra.mxu0 0
    %107 = vmatpush.bf16.msra.mxu0 %v94
    %108 = vmatmul.bf16.gmra.mxu0 %v98
    %v109 = vpop.f32.mrf.mxu0
    %v110 = vadd.f32 %v88, %v109
    %v111 = vpop.f32.mrf.mxu0
    %112 = vdwg.mxu0
    %v113 = vld [vmem:[%s2] sm:$0xf]
    %v114 = vld [vmem:[%s2 + $0x4] sm:$0xf]
    %v115 = vld [vmem:[%s2 + $0x8] sm:$0xf]
    %v116 = vld [vmem:[%s2 + $0xc] sm:$0xf]
    %v121 = vunpack.c.l.b16 %v113
    %v122 = vunpack.c.l.b16 %v114
    %v123 = vunpack.c.l.b16 %v115
    %v124 = vunpack.c.l.b16 %v116
    %v125 = vpack.c.b16 %v122, %v121
    %v126 = vpack.c.b16 %v124, %v123
    %vm129 = vcmask 261120
    %v131 = vsel %vm129, 0, 0
    %133 = vmatpush.bf16.msra.mxu0 0
    %134 = vmatpush.bf16.msra.mxu0 0
    %135 = vmatpush.bf16.msra.mxu0 0
    %136 = vmatpush.bf16.msra.mxu0 0
    %137 = vmatpush.bf16.msra.mxu0 0
    %138 = vmatpush.bf16.msra.mxu0 0
    %139 = vmatpush.bf16.msra.mxu0 %v126
    %140 = vmatpush.bf16.msra.mxu0 %v125
    %141 = vmatmul.bf16.gmra.mxu0 %v131
    %v142 = vpop.f32.mrf.mxu0
    %v143 = vadd.f32 0.0, %v142
    %v144 = vpop.f32.mrf.mxu0
    %145 = vdwg.mxu0
    %v146 = vadd.f32 %v110, %v143
    %v147 = vxor.u32 %v146, 2147483648
    %v148 = vmul.f32 %v147, 1.442695
    %v149 = vpow.pop %v148
    %v150 = vadd.f32 %v149, 1.0
    %v151 = vrcp.pop %v150
    %v152 = vmul.f32 %v150, %v151
    %v153 = vsub.f32 1.0, %v152
    %v154 = vmul.f32 %v151, %v153
    %v155 = vadd.f32 %v151, %v154
    %vm156 = vweird.f32 %v150
    %vm157 = vweird.f32 %v151
    %vm158 = vmor %vm156, %vm157
    %v159 = vsel %vm158, %v151, %v155
    %v160 = vand.u32 2147483647, %v150
    %vm161 = vcmp.eq.f32.partialorder %v160, 8.507059e+37
    %v162 = vand.u32 %v150, 2147483648
    %v163 = vor.u32 1.1754944e-38, %v162
    %v164 = vsel %vm161, %v163, %v159
    %v165 = vmul.f32 1.0, %v164
    %v166 = vtanh.pop %v146
    %167 = vrot.lane.b32.xlu0 %v165, 96
    %v168 = vpop.permute.xlu0 %167
    %169 = vrot.lane.b32.xlu0 %v166, 64
    %v170 = vpop.permute.xlu0 %169
    %171 = vrot.lane.b32.xlu0 %v165, 32
    %v172 = vpop.permute.xlu0 %171
    %v173 = vmul.f32 %v168, 0.0
    %v174 = vmul.f32 %v165, %v170
    %v175 = vadd.f32 %v173, %v174
    %v176 = vtanh.pop %v175
    %v177 = vmul.f32 %v172, %v176
    %v178 = vpack.c.bf16 %v177, %v177
    %v180 = vsel %vm129, %v178, 0
    %182 = vmatpush.bf16.msra.mxu0 0
    %183 = vmatpush.bf16.msra.mxu0 0
    %184 = vmatpush.bf16.msra.mxu0 0
    %185 = vmatpush.bf16.msra.mxu0 0
    %186 = vmatpush.bf16.msra.mxu0 0
    %187 = vmatpush.bf16.msra.mxu0 0
    %188 = vmatpush.bf16.msra.mxu0 %v126
    %189 = vmatpush.bf16.msra.mxu0 %v125
    %190 = vmatmul.bf16.gmra.mxu0 %v180
    %v191 = vpop.f32.mrf.mxu0
    %v192 = vadd.f32 0.0, %v191
    %v193 = vpop.f32.mrf.mxu0
    %194 = vdwg.mxu0
    %v196 = vrot.slane %v192, 7
    %v198 = vadd.f32 %v110, %v196
    %v199 = vxor.u32 %v198, 2147483648
    %v200 = vmul.f32 %v199, 1.442695
    %v201 = vpow.pop %v200
    %v202 = vadd.f32 %v201, 1.0
    %v203 = vrcp.pop %v202
    %v204 = vmul.f32 %v202, %v203
    %v205 = vsub.f32 1.0, %v204
    %v206 = vmul.f32 %v203, %v205
    %v207 = vadd.f32 %v203, %v206
    %vm208 = vweird.f32 %v202
    %vm209 = vweird.f32 %v203
    %vm210 = vmor %vm208, %vm209
    %v211 = vsel %vm210, %v203, %v207
    %v212 = vand.u32 2147483647, %v202
    %vm213 = vcmp.eq.f32.partialorder %v212, 8.507059e+37
    %v214 = vand.u32 %v202, 2147483648
    %v215 = vor.u32 1.1754944e-38, %v214
    %v216 = vsel %vm213, %v215, %v211
    %v217 = vmul.f32 1.0, %v216
    %v218 = vtanh.pop %v198
    %v220 = vrot.slane %v217, 1
    %222 = vrot.lane.b32.xlu0 %v220, 96
    %v223 = vpop.permute.xlu0 %222
    %v225 = vrot.slane %v218, 1
    %227 = vrot.lane.b32.xlu0 %v225, 64
    %v228 = vpop.permute.xlu0 %227
    %229 = vrot.lane.b32.xlu0 %v220, 32
    %v230 = vpop.permute.xlu0 %229
    %v231 = vmul.f32 %v223, %v175
    %v233 = vrot.slane %v228, 7
    %v235 = vmul.f32 %v217, %v233
    %v237 = vrot.slane %v235, 1
    %v239 = vadd.f32 %v231, %v237
    %v240 = vtanh.pop %v239
    %v241 = vmul.f32 %v230, %v240
    %v242 = vpack.c.bf16 %v241, %v241
    %v244 = vsel %vm129, %v242, 0
    %246 = vmatpush.bf16.msra.mxu0 0
    %247 = vmatpush.bf16.msra.mxu0 0
    %248 = vmatpush.bf16.msra.mxu0 0
    %249 = vmatpush.bf16.msra.mxu0 0
    %250 = vmatpush.bf16.msra.mxu0 0
    %251 = vmatpush.bf16.msra.mxu0 0
    %252 = vmatpush.bf16.msra.mxu0 %v126
    %253 = vmatpush.bf16.msra.mxu0 %v125
    %254 = vmatmul.bf16.gmra.mxu0 %v244
    %v255 = vpop.f32.mrf.mxu0
    %v256 = vadd.f32 0.0, %v255
    %v257 = vpop.f32.mrf.mxu0
    %258 = vdwg.mxu0
    %v260 = vrot.slane %v256, 6
    %v262 = vadd.f32 %v110, %v260
    %v263 = vxor.u32 %v262, 2147483648
    %v264 = vmul.f32 %v263, 1.442695
    %v265 = vpow.pop %v264
    %v266 = vadd.f32 %v265, 1.0
    %v267 = vrcp.pop %v266
    %v268 = vmul.f32 %v266, %v267
    %v269 = vsub.f32 1.0, %v268
    %v270 = vmul.f32 %v267, %v269
    %v271 = vadd.f32 %v267, %v270
    %vm272 = vweird.f32 %v266
    %vm273 = vweird.f32 %v267
    %vm274 = vmor %vm272, %vm273
    %v275 = vsel %vm274, %v267, %v271
    %v276 = vand.u32 2147483647, %v266
    %vm277 = vcmp.eq.f32.partialorder %v276, 8.507059e+37
    %v278 = vand.u32 %v266, 2147483648
    %v279 = vor.u32 1.1754944e-38, %v278
    %v280 = vsel %vm277, %v279, %v275
    %v281 = vmul.f32 1.0, %v280
    %v282 = vtanh.pop %v262
    %v284 = vrot.slane %v281, 2
    %286 = vrot.lane.b32.xlu0 %v284, 96
    %v287 = vpop.permute.xlu0 %286
    %v289 = vrot.slane %v282, 2
    %291 = vrot.lane.b32.xlu0 %v289, 64
    %v292 = vpop.permute.xlu0 %291
    %293 = vrot.lane.b32.xlu0 %v284, 32
    %v294 = vpop.permute.xlu0 %293
    %v295 = vmul.f32 %v287, %v239
    %v297 = vrot.slane %v292, 6
    %v299 = vmul.f32 %v281, %v297
    %v301 = vrot.slane %v299, 2
    %v303 = vadd.f32 %v295, %v301
    %v304 = vtanh.pop %v303
    %v305 = vmul.f32 %v294, %v304
    %v306 = vpack.c.bf16 %v305, %v305
    %v308 = vsel %vm129, %v306, 0
    %310 = vmatpush.bf16.msra.mxu0 0
    %311 = vmatpush.bf16.msra.mxu0 0
    %312 = vmatpush.bf16.msra.mxu0 0
    %313 = vmatpush.bf16.msra.mxu0 0
    %314 = vmatpush.bf16.msra.mxu0 0
    %315 = vmatpush.bf16.msra.mxu0 0
    %316 = vmatpush.bf16.msra.mxu0 %v126
    %317 = vmatpush.bf16.msra.mxu0 %v125
    %318 = vmatmul.bf16.gmra.mxu0 %v308
    %v319 = vpop.f32.mrf.mxu0
    %v320 = vadd.f32 0.0, %v319
    %v321 = vpop.f32.mrf.mxu0
    %322 = vdwg.mxu0
    %v324 = vrot.slane %v320, 5
    %v326 = vadd.f32 %v110, %v324
    %v327 = vxor.u32 %v326, 2147483648
    %v328 = vmul.f32 %v327, 1.442695
    %v329 = vpow.pop %v328
    %v330 = vadd.f32 %v329, 1.0
    %v331 = vrcp.pop %v330
    %v332 = vmul.f32 %v330, %v331
    %v333 = vsub.f32 1.0, %v332
    %v334 = vmul.f32 %v331, %v333
    %v335 = vadd.f32 %v331, %v334
    %vm336 = vweird.f32 %v330
    %vm337 = vweird.f32 %v331
    %vm338 = vmor %vm336, %vm337
    %v339 = vsel %vm338, %v331, %v335
    %v340 = vand.u32 2147483647, %v330
    %vm341 = vcmp.eq.f32.partialorder %v340, 8.507059e+37
    %v342 = vand.u32 %v330, 2147483648
    %v343 = vor.u32 1.1754944e-38, %v342
    %v344 = vsel %vm341, %v343, %v339
    %v345 = vmul.f32 1.0, %v344
    %v346 = vtanh.pop %v326
    %v348 = vrot.slane %v345, 3
    %350 = vrot.lane.b32.xlu0 %v348, 96
    %v351 = vpop.permute.xlu0 %350
    %v353 = vrot.slane %v346, 3
    %355 = vrot.lane.b32.xlu0 %v353, 64
    %v356 = vpop.permute.xlu0 %355
    %357 = vrot.lane.b32.xlu0 %v348, 32
    %v358 = vpop.permute.xlu0 %357
    %v359 = vmul.f32 %v351, %v303
    %v361 = vrot.slane %v356, 5
    %v363 = vmul.f32 %v345, %v361
    %v365 = vrot.slane %v363, 3
    %v367 = vadd.f32 %v359, %v365
    %v368 = vtanh.pop %v367
    %v369 = vmul.f32 %v358, %v368
    %v370 = vpack.c.bf16 %v369, %v369
    %v372 = vsel %vm129, %v370, 0
    %374 = vmatpush.bf16.msra.mxu0 0
    %375 = vmatpush.bf16.msra.mxu0 0
    %376 = vmatpush.bf16.msra.mxu0 0
    %377 = vmatpush.bf16.msra.mxu0 0
    %378 = vmatpush.bf16.msra.mxu0 0
    %379 = vmatpush.bf16.msra.mxu0 0
    %380 = vmatpush.bf16.msra.mxu0 %v126
    %381 = vmatpush.bf16.msra.mxu0 %v125
    %382 = vmatmul.bf16.gmra.mxu0 %v372
    %v383 = vpop.f32.mrf.mxu0
    %v384 = vadd.f32 0.0, %v383
    %v385 = vpop.f32.mrf.mxu0
    %386 = vdwg.mxu0
    %v388 = vrot.slane %v384, 4
    %v390 = vadd.f32 %v110, %v388
    %v391 = vxor.u32 %v390, 2147483648
    %v392 = vmul.f32 %v391, 1.442695
    %v393 = vpow.pop %v392
    %v394 = vadd.f32 %v393, 1.0
    %v395 = vrcp.pop %v394
    %v396 = vmul.f32 %v394, %v395
    %v397 = vsub.f32 1.0, %v396
    %v398 = vmul.f32 %v395, %v397
    %v399 = vadd.f32 %v395, %v398
    %vm400 = vweird.f32 %v394
    %vm401 = vweird.f32 %v395
    %vm402 = vmor %vm400, %vm401
    %v403 = vsel %vm402, %v395, %v399
    %v404 = vand.u32 2147483647, %v394
    %vm405 = vcmp.eq.f32.partialorder %v404, 8.507059e+37
    %v406 = vand.u32 %v394, 2147483648
    %v407 = vor.u32 1.1754944e-38, %v406
    %v408 = vsel %vm405, %v407, %v403
    %v409 = vmul.f32 1.0, %v408
    %v410 = vtanh.pop %v390
    %v412 = vrot.slane %v409, 4
    %414 = vrot.lane.b32.xlu0 %v412, 96
    %v415 = vpop.permute.xlu0 %414
    %v417 = vrot.slane %v410, 4
    %419 = vrot.lane.b32.xlu0 %v417, 64
    %v420 = vpop.permute.xlu0 %419
    %421 = vrot.lane.b32.xlu0 %v412, 32
    %v422 = vpop.permute.xlu0 %421
    %v423 = vmul.f32 %v415, %v367
    %v425 = vrot.slane %v420, 4
    %v427 = vmul.f32 %v409, %v425
    %v429 = vrot.slane %v427, 4
    %v431 = vadd.f32 %v423, %v429
    %v432 = vtanh.pop %v431
    %v433 = vmul.f32 %v422, %v432
    %v434 = vpack.c.bf16 %v433, %v433
    %v436 = vsel %vm129, %v434, 0
    %438 = vmatpush.bf16.msra.mxu0 0
    %439 = vmatpush.bf16.msra.mxu0 0
    %440 = vmatpush.bf16.msra.mxu0 0
    %441 = vmatpush.bf16.msra.mxu0 0
    %442 = vmatpush.bf16.msra.mxu0 0
    %443 = vmatpush.bf16.msra.mxu0 0
    %444 = vmatpush.bf16.msra.mxu0 %v126
    %445 = vmatpush.bf16.msra.mxu0 %v125
    %446 = vmatmul.bf16.gmra.mxu0 %v436
    %v447 = vpop.f32.mrf.mxu0
    %v448 = vadd.f32 0.0, %v447
    %v449 = vpop.f32.mrf.mxu0
    %450 = vdwg.mxu0
    %v452 = vrot.slane %v448, 3
    %v454 = vadd.f32 %v110, %v452
    %v455 = vxor.u32 %v454, 2147483648
    %v456 = vmul.f32 %v455, 1.442695
    %v457 = vpow.pop %v456
    %v458 = vadd.f32 %v457, 1.0
    %v459 = vrcp.pop %v458
    %v460 = vmul.f32 %v458, %v459
    %v461 = vsub.f32 1.0, %v460
    %v462 = vmul.f32 %v459, %v461
    %v463 = vadd.f32 %v459, %v462
    %vm464 = vweird.f32 %v458
    %vm465 = vweird.f32 %v459
    %vm466 = vmor %vm464, %vm465
    %v467 = vsel %vm466, %v459, %v463
    %v468 = vand.u32 2147483647, %v458
    %vm469 = vcmp.eq.f32.partialorder %v468, 8.507059e+37
    %v470 = vand.u32 %v458, 2147483648
    %v471 = vor.u32 1.1754944e-38, %v470
    %v472 = vsel %vm469, %v471, %v467
    %v473 = vmul.f32 1.0, %v472
    %v474 = vtanh.pop %v454
    %v476 = vrot.slane %v473, 5
    %478 = vrot.lane.b32.xlu0 %v476, 96
    %v479 = vpop.permute.xlu0 %478
    %v481 = vrot.slane %v474, 5
    %483 = vrot.lane.b32.xlu0 %v481, 64
    %v484 = vpop.permute.xlu0 %483
    %485 = vrot.lane.b32.xlu0 %v476, 32
    %v486 = vpop.permute.xlu0 %485
    %v487 = vmul.f32 %v479, %v431
    %v489 = vrot.slane %v484, 3
    %v491 = vmul.f32 %v473, %v489
    %v493 = vrot.slane %v491, 5
    %v495 = vadd.f32 %v487, %v493
    %v496 = vtanh.pop %v495
    %v497 = vmul.f32 %v486, %v496
    %v498 = vpack.c.bf16 %v497, %v497
    %v500 = vsel %vm129, %v498, 0
    %502 = vmatpush.bf16.msra.mxu0 0
    %503 = vmatpush.bf16.msra.mxu0 0
    %504 = vmatpush.bf16.msra.mxu0 0
    %505 = vmatpush.bf16.msra.mxu0 0
    %506 = vmatpush.bf16.msra.mxu0 0
    %507 = vmatpush.bf16.msra.mxu0 0
    %508 = vmatpush.bf16.msra.mxu0 %v126
    %509 = vmatpush.bf16.msra.mxu0 %v125
    %510 = vmatmul.bf16.gmra.mxu0 %v500
    %v511 = vpop.f32.mrf.mxu0
    %v512 = vadd.f32 0.0, %v511
    %v513 = vpop.f32.mrf.mxu0
    %514 = vdwg.mxu0
    %v516 = vrot.slane %v512, 2
    %v518 = vadd.f32 %v110, %v516
    %v519 = vxor.u32 %v518, 2147483648
    %v520 = vmul.f32 %v519, 1.442695
    %v521 = vpow.pop %v520
    %v522 = vadd.f32 %v521, 1.0
    %v523 = vrcp.pop %v522
    %v524 = vmul.f32 %v522, %v523
    %v525 = vsub.f32 1.0, %v524
    %v526 = vmul.f32 %v523, %v525
    %v527 = vadd.f32 %v523, %v526
    %vm528 = vweird.f32 %v522
    %vm529 = vweird.f32 %v523
    %vm530 = vmor %vm528, %vm529
    %v531 = vsel %vm530, %v523, %v527
    %v532 = vand.u32 2147483647, %v522
    %vm533 = vcmp.eq.f32.partialorder %v532, 8.507059e+37
    %v534 = vand.u32 %v522, 2147483648
    %v535 = vor.u32 1.1754944e-38, %v534
    %v536 = vsel %vm533, %v535, %v531
    %v537 = vmul.f32 1.0, %v536
    %v538 = vtanh.pop %v518
    %v540 = vrot.slane %v537, 6
    %542 = vrot.lane.b32.xlu0 %v540, 96
    %v543 = vpop.permute.xlu0 %542
    %v545 = vrot.slane %v538, 6
    %547 = vrot.lane.b32.xlu0 %v545, 64
    %v548 = vpop.permute.xlu0 %547
    %549 = vrot.lane.b32.xlu0 %v540, 32
    %v550 = vpop.permute.xlu0 %549
    %v551 = vmul.f32 %v543, %v495
    %v553 = vrot.slane %v548, 2
    %v555 = vmul.f32 %v537, %v553
    %v557 = vrot.slane %v555, 6
    %v559 = vadd.f32 %v551, %v557
    %v560 = vtanh.pop %v559
    %v561 = vmul.f32 %v550, %v560
    %v562 = vpack.c.bf16 %v561, %v561
    %v564 = vsel %vm129, %v562, 0
    %566 = vmatpush.bf16.msra.mxu0 0
    %567 = vmatpush.bf16.msra.mxu0 0
    %568 = vmatpush.bf16.msra.mxu0 0
    %569 = vmatpush.bf16.msra.mxu0 0
    %570 = vmatpush.bf16.msra.mxu0 0
    %571 = vmatpush.bf16.msra.mxu0 0
    %572 = vmatpush.bf16.msra.mxu0 %v126
    %573 = vmatpush.bf16.msra.mxu0 %v125
    %574 = vmatmul.bf16.gmra.mxu0 %v564
    %v575 = vpop.f32.mrf.mxu0
    %v576 = vadd.f32 0.0, %v575
    %v577 = vpop.f32.mrf.mxu0
    %578 = vdwg.mxu0
    %v580 = vrot.slane %v576, 1
    %v582 = vadd.f32 %v110, %v580
    %v583 = vxor.u32 %v582, 2147483648
    %v584 = vmul.f32 %v583, 1.442695
    %v585 = vpow.pop %v584
    %v586 = vadd.f32 %v585, 1.0
    %v587 = vrcp.pop %v586
    %v588 = vmul.f32 %v586, %v587
    %v589 = vsub.f32 1.0, %v588
    %v590 = vmul.f32 %v587, %v589
    %v591 = vadd.f32 %v587, %v590
    %vm592 = vweird.f32 %v586
    %vm593 = vweird.f32 %v587
    %vm594 = vmor %vm592, %vm593
    %v595 = vsel %vm594, %v587, %v591
    %v596 = vand.u32 2147483647, %v586
    %vm597 = vcmp.eq.f32.partialorder %v596, 8.507059e+37
    %v598 = vand.u32 %v586, 2147483648
    %v599 = vor.u32 1.1754944e-38, %v598
    %v600 = vsel %vm597, %v599, %v595
    %v601 = vmul.f32 1.0, %v600
    %v602 = vtanh.pop %v582
    %v604 = vrot.slane %v601, 7
    %606 = vrot.lane.b32.xlu0 %v604, 96
    %v607 = vpop.permute.xlu0 %606
    %v609 = vrot.slane %v602, 7
    %611 = vrot.lane.b32.xlu0 %v609, 64
    %v612 = vpop.permute.xlu0 %611
    %613 = vrot.lane.b32.xlu0 %v604, 32
    %v614 = vpop.permute.xlu0 %613
    %v615 = vmul.f32 %v607, %v559
    %v617 = vrot.slane %v612, 1
    %v619 = vmul.f32 %v601, %v617
    %v621 = vrot.slane %v619, 7
    %v623 = vadd.f32 %v615, %v621
    %v624 = vtanh.pop %v623
    %v625 = vmul.f32 %v614, %v624
    %v626 = vmax.f32 %v625, 0.0
    %v627 = vpack.c.bf16 %v626, %v626
    %v628 = vld [vmem:[#allocation3] sm:$0xf]
    %v629 = vld [vmem:[#allocation3 + $0x4] sm:$0xf]
    %v630 = vld [vmem:[#allocation3 + $0x8] sm:$0xf]
    %v631 = vld [vmem:[#allocation3 + $0xc] sm:$0xf]
    %v632 = vld [vmem:[#allocation6] sm:$0x1]
    %v637 = vunpack.c.l.b16 %v628
    %v638 = vunpack.c.l.b16 %v629
    %v639 = vunpack.c.l.b16 %v630
    %v640 = vunpack.c.l.b16 %v631
    %v641 = vpack.c.b16 %v638, %v637
    %v642 = vpack.c.b16 %v640, %v639
    %v646 = vsel %vm129, %v627, 0
    %648 = vmatpush.bf16.msra.mxu0 0
    %649 = vmatpush.bf16.msra.mxu0 0
    %650 = vmatpush.bf16.msra.mxu0 0
    %651 = vmatpush.bf16.msra.mxu0 0
    %652 = vmatpush.bf16.msra.mxu0 0
    %653 = vmatpush.bf16.msra.mxu0 0
    %654 = vmatpush.bf16.msra.mxu0 %v642
    %655 = vmatpush.bf16.msra.mxu0 %v641
    %656 = vmatmul.bf16.gmra.mxu0 %v646
    %v657 = vpop.f32.mrf.mxu0
    %v658 = vadd.f32 %v632, %v657
    %v659 = vpop.f32.mrf.mxu0
    %660 = vdwg.mxu0
    %v661 = vmax.f32 %v658, 0.0
    %v662 = vpack.c.bf16 %v661, %v661
    %v663 = vld [vmem:[%s6] sm:$0xf]
    %v664 = vld [vmem:[%s6 + $0x4] sm:$0xf]
    %v665 = vld [vmem:[%s6 + $0x8] sm:$0xf]
    %v666 = vld [vmem:[%s6 + $0xc] sm:$0xf]
    %v667 = vld [vmem:[#allocation8] sm:$0x1]
    %v672 = vunpack.c.l.b16 %v663
    %v673 = vunpack.c.l.b16 %v664
    %v674 = vunpack.c.l.b16 %v665
    %v675 = vunpack.c.l.b16 %v666
    %v676 = vpack.c.b16 %v673, %v672
    %v677 = vpack.c.b16 %v675, %v674
    %v681 = vsel %vm129, %v662, 0
    %683 = vmatpush.bf16.msra.mxu0 0
    %684 = vmatpush.bf16.msra.mxu0 0
    %685 = vmatpush.bf16.msra.mxu0 0
    %686 = vmatpush.bf16.msra.mxu0 0
    %687 = vmatpush.bf16.msra.mxu0 0
    %688 = vmatpush.bf16.msra.mxu0 0
    %689 = vmatpush.bf16.msra.mxu0 %v677
    %690 = vmatpush.bf16.msra.mxu0 %v676
    %691 = vmatmul.bf16.gmra.mxu0 %v681
    %v692 = vpop.f32.mrf.mxu0
    %v693 = vadd.f32 %v667, %v692
    %v694 = vpop.f32.mrf.mxu0
    %695 = vdwg.mxu0
    %v696 = vmax.f32 %v693, 0.0
    %v697 = vpack.c.bf16 %v696, %v696
    %v698 = vld [vmem:[%s8] sm:$0xf]
    %v699 = vld [vmem:[%s8 + $0x4] sm:$0xf]
    %v700 = vld [vmem:[#allocation2] sm:$0x1]
    %v703 = vunpack.c.l.b16 %v698
    %v704 = vunpack.c.l.b16 %v699
    %v705 = vpack.c.b16 %v704, %v703
    %v708 = vsel %vm96, %v697, 0
    %710 = vmatpush.bf16.msra.mxu0 0
    %711 = vmatpush.bf16.msra.mxu0 0
    %712 = vmatpush.bf16.msra.mxu0 0
    %713 = vmatpush.bf16.msra.mxu0 0
    %714 = vmatpush.bf16.msra.mxu0 0
    %715 = vmatpush.bf16.msra.mxu0 0
    %716 = vmatpush.bf16.msra.mxu0 0
    %717 = vmatpush.bf16.msra.mxu0 %v705
    %718 = vmatmul.bf16.gmra.mxu0 %v708
    %v719 = vpop.f32.mrf.mxu0
    %v720 = vadd.f32 %v700, %v719
    %v721 = vpop.f32.mrf.mxu0
    %722 = vdwg.mxu0
    %v723 = vxor.u32 %v720, 2147483648
    %v724 = vmul.f32 %v723, 1.442695
    %v725 = vpow.pop %v724
    %v726 = vadd.f32 %v725, 1.0
    %v727 = vrcp.pop %v726
    %v728 = vmul.f32 %v726, %v727
    %v729 = vsub.f32 1.0, %v728
    %v730 = vmul.f32 %v727, %v729
    %v731 = vadd.f32 %v727, %v730
    %vm732 = vweird.f32 %v726
    %vm733 = vweird.f32 %v727
    %vm734 = vmor %vm732, %vm733
    %v735 = vsel %vm734, %v727, %v731
    %v736 = vand.u32 2147483647, %v726
    %vm737 = vcmp.eq.f32.partialorder %v736, 8.507059e+37
    %v738 = vand.u32 %v726, 2147483648
    %v739 = vor.u32 1.1754944e-38, %v738
    %v740 = vsel %vm737, %v739, %v735
    %v741 = vmul.f32 1.0, %v740
    %vm742 = vcmask 0
    %743 = vst.msk [vmem:[#allocation9] sm:$0x1] %vm742, %v741
    // Predicated region
    $region54: #{critic_forward_many.1} parent=1 // pred_check
      _
    $region55: #{critic_forward_many.1} parent=1 // pred_check_branch
      %745 = sbr.rel (0) target = $region57
    $region56: #{critic_forward_many.1} parent=1 // pred_region
      %747 = vsyncadd [#allocation5], 0
      %s749 = sshll.u32 [#allocation9], 4
      %s750 = int_to_ptr.vmem [resolvable:$true] %s749
      %s751 = sshll.u32 %s10, 4
      %s752 = int_to_ptr.hbm [resolvable:$true] %s751
      %754 = dma.vmem_to_hbm [thread:$0]  %s750, 16, %s752, [#allocation5]
    $region57: #{critic_forward_many.1} parent=1 // pred_fallthru
      _
    // Predicated region
    $region58: #{critic_forward_many.1} parent=1 // pred_check
      _
    $region59: #{critic_forward_many.1} parent=1 // pred_check_branch
      %756 = sbr.rel (0) target = $region61
    $region60: #{critic_forward_many.1} parent=1 // pred_region
      %758 = dma.done [#allocation5], 16
    $region61: #{critic_forward_many.1} parent=1 // pred_fallthru
      _
    %759 = vsyncpa [#allocation4], 1
    %760 = vsyncpa [#allocation7], 1
    %761 = vsyncpa [#allocation5], 1

</llo_original>
